<compile_context>
chip_gen: v5e
topology: v5e:2x2
jax: 0.10.0
libtpu: 0.0.40
codegen_flags: <defaults>
</compile_context>

<pallas_src>
import functools

import numpy as np
import jax
import jax.numpy as jnp
from jax.experimental import pallas as pl
from jax.experimental.pallas import tpu as pltpu


# ----------------------------------------------------------------------------
# Exact reproduction of the PyTorch weight construction (for the reference).
# ----------------------------------------------------------------------------
def gaussian_blur_mat(n, std):
    """Corner-anchored Gaussian with the module's 3.14156 constant."""
    m = np.zeros((n, n), dtype=np.float32)
    for i in range(n):
        for j in range(n):
            m[i, j] = np.exp(-(i * i + j * j) / (2.0 * std * std)) / (
                np.sqrt(2.0 * 3.14156) * std
            )
    return m


def make_gaussian_blur_weights(K, std, in_ch=3, out_ch=3):
    """nn.Conv2d(3, 3, K) weight: gauss_mat repeated over (out, in), OIHW."""
    g = gaussian_blur_mat(K, std)
    return jnp.asarray(np.broadcast_to(g, (out_ch, in_ch, K, K)).copy(),
                       dtype=jnp.float32)


# ----------------------------------------------------------------------------
# Host-side precomputed tap masks (coefficients folded in).
# ----------------------------------------------------------------------------
def _build_tap_masks(K, std, H, W):
    """(2K, HW) f32: rows [0,K) vertical band masks * u[ky],
    rows [K,2K) horizontal column masks * (norm * u[kx])."""
    P = (K - 1) // 2
    HW = H * W
    u = np.exp(-(np.arange(K, dtype=np.float64) ** 2) / (2.0 * std * std))
    norm = 1.0 / (np.sqrt(2.0 * 3.14156) * std)
    p = np.arange(HW)
    col = p % W
    masks = np.zeros((2 * K, HW), dtype=np.float32)
    for ky in range(K):
        dy = ky - P
        src = p + dy * W                       # flat source index of this tap
        masks[ky] = u[ky] * ((src >= 0) & (src < HW))
    for kx in range(K):
        dx = kx - P
        masks[K + kx] = (norm * u[kx]) * ((col + dx >= 0) & (col + dx < W))
    return jnp.asarray(masks)


# ----------------------------------------------------------------------------
# Kernel.
# ----------------------------------------------------------------------------
def _gauss_blur_kernel(mask_ref, x_ref, o_ref, *, HW, W, K, P, C, O):
    # x_ref: (nb, C*HW) channel-in-lanes layout; o_ref: (nb, O*HW);
    # mask_ref: (2K, HW) coefficient-weighted border masks.

    # Channel sum (all (o, c) weights are identical); f32 accumulation.
    s = x_ref[:, 0:HW].astype(jnp.float32)
    for c in range(1, C):
        s = s + x_ref[:, c * HW:(c + 1) * HW].astype(jnp.float32)

    # Vertical 1-D pass: a row shift of dy is a lane shift of dy*W in the
    # flattened layout.  Out-of-image rows (incl. the roll wrap-around) are
    # zeroed by the precomputed band mask, so each tap is roll + mul + add.
    v = mask_ref[P:P + 1, :] * s
    for ky in range(K):
        dy = ky - P
        if dy == 0:
            continue
        r = pltpu.roll(s, shift=(-dy * W) % HW, axis=1)
        v = v + mask_ref[ky:ky + 1, :] * r

    # Horizontal 1-D pass (norm folded into the horizontal mask rows); the
    # column masks kill lanes whose shift crossed a row boundary (and the
    # wrap-around at the array ends).
    out = mask_ref[K + P:K + P + 1, :] * v
    for kx in range(K):
        dx = kx - P
        if dx == 0:
            continue
        r = pltpu.roll(v, shift=(-dx) % HW, axis=1)
        out = out + mask_ref[K + kx:K + kx + 1, :] * r

    # Every output channel is identical; write O unmasked lane-dense slices.
    out = out.astype(o_ref.dtype)
    for o in range(O):
        o_ref[:, o * HW:(o + 1) * HW] = out


# ----------------------------------------------------------------------------
# Block-size heuristic and wrapper.
# ----------------------------------------------------------------------------
_VMEM_LIMIT_BYTES = 32 * 1024 * 1024       # safe on v5e/v6e (128 MiB) and v7x (64 MiB)
_VMEM_BLOCK_BUDGET = int(0.7 * _VMEM_LIMIT_BYTES)   # headroom for masks/internal


def _pick_nb(N, C, O, HW, itemsize):
    """Batch rows per grid step."""
    # Per batch element per step: double-buffered input+output blocks plus
    # ~6 live f32 temporaries (s, v, out, one rolled tap, casts, mask bcast).
    per_b = (2 * (C + O) * itemsize + 6 * 4) * HW
    fit = max(1, _VMEM_BLOCK_BUDGET // per_b)
    # Each step should move >= ~0.5 MiB of input (amortizes ~0.35us/step).
    step_min = max(1, -(-(512 * 1024) // (C * HW * itemsize)))

    # Legal/efficient block heights: the full batch, or a multiple-of-8
    # divisor of N (full 8-sublane vreg occupancy, legal sublane block dim).
    cands = [N] if N <= fit else []
    cands += [d for d in range(8, N, 8) if N % d == 0 and d <= fit]
    if not cands:
        # Fall back to the largest divisor of N that fits VMEM (sublane dim
        # < 8 lowers with partially-masked sublanes; still correct).
        cands = [d for d in range(1, N + 1) if N % d == 0 and d <= fit] or [1]

    # Prefer: (1) each step moves >= ~0.5 MiB of input, (2) >= 2 grid steps so
    # v7x's two TensorCores both get work, (3) the largest block.
    def score(nb):
        return (nb >= step_min, (N // nb) >= 2, nb)

    return max(cands, key=score)


def gaussian_blur_forward(x, K, std, *, nb=None):
    """x: (N, 3, H, W) -> (N, 3, H, W), matching gaussianBlur(K, std).forward."""
    N, C, H, W = x.shape
    assert C == 3, "module is nn.Conv2d(3, 3, ...)"
    O = 3
    assert K % 2 == 1, "only odd K keeps the (H, W) output size with P=(K-1)//2"
    P = (K - 1) // 2
    HW = H * W
    # Note: HW is ideally a multiple of 128 so the per-channel lane slices are
    # lane-aligned (true here: 16*16 = 256); other sizes remain correct.

    if nb is None:
        nb = _pick_nb(N, C, O, HW, x.dtype.itemsize)
    assert N % nb == 0

    masks = _build_tap_masks(K, std, H, W)          # (2K, HW) f32, tiny
    x_flat = x.reshape(N, C * HW)                   # free contiguous reshape

    kernel = functools.partial(
        _gauss_blur_kernel, HW=HW, W=W, K=K, P=P, C=C, O=O)

    out_flat = pl.pallas_call(
        kernel,
        out_shape=jax.ShapeDtypeStruct((N, O * HW), x.dtype),
        grid=(N // nb,),
        in_specs=[
            # Constant block -> fetched once, stays resident across the grid.
            pl.BlockSpec((2 * K, HW), lambda i: (0, 0)),
            pl.BlockSpec((nb, C * HW), lambda i: (i, 0)),
        ],
        out_specs=pl.BlockSpec((nb, O * HW), lambda i: (i, 0)),
        compiler_params=pltpu.CompilerParams(
            # Batch steps are independent -> v7x's 2 TensorCores split them.
            dimension_semantics=("parallel",),
            vmem_limit_bytes=_VMEM_LIMIT_BYTES,
        ),
    )(masks, x_flat)
    return out_flat.reshape(N, O, H, W)


if __name__ == "__main__":
    K, std = 3, 1.0
    N, C, H, W = 2, 3, 16, 16  # Conv2d(3, 3, ...) => 3 input / 3 output channels

    key = jax.random.PRNGKey(0)
    x = jax.random.normal(key, (N, C, H, W), dtype=jnp.float32)

    out = gaussian_blur_forward(x, K, std)
    out = jax.block_until_ready(out)

    # Reference: the exact module conv (cross-correlation with repeated weights).
    w = make_gaussian_blur_weights(K, std)
    P = (K - 1) // 2
    ref = jax.lax.conv_general_dilated(
        x, w, window_strides=(1, 1), padding=[(P, P), (P, P)],
        dimension_numbers=("NCHW", "OIHW", "NCHW"),
        precision=jax.lax.Precision.HIGHEST,
    )
    assert out.shape == (N, 3, H, W)
    assert jnp.allclose(out, ref, atol=1e-4, rtol=1e-4), "mismatch vs reference conv"

    print("KERNEL_OK")
</pallas_src>

<mosaic_0001>
module attributes {stable_mosaic.version = 11 : i64} {
  func.func @_gauss_blur_kernel(%arg0: i32, %arg1: memref<6x256xf32, #tpu.memory_space<vmem>>, %arg2: memref<2x768xf32, #tpu.memory_space<vmem>>, %arg3: memref<2x768xf32, #tpu.memory_space<vmem>>) attributes {dimension_semantics = [#tpu.dimension_semantics<parallel>], iteration_bounds = array<i64: 1>, scalar_prefetch = 0 : i64, scratch_operands = 0 : i64, tpu.core_type = #tpu.core_type<tc>, window_params = [{pipeline_mode = #tpu.pipeline_mode<synchronous>, transform_indices = @transform_0, window_bounds = array<i64: 6, 256>}, {transform_indices = @transform_1, window_bounds = array<i64: 2, 768>}, {transform_indices = @transform_2, window_bounds = array<i64: 2, 768>}]} {
    %c0 = arith.constant 0 : index
    %c0_0 = arith.constant 0 : index
    %0 = vector.load %arg2[%c0, %c0_0] : memref<2x768xf32, #tpu.memory_space<vmem>>, vector<2x256xf32>
    %c0_1 = arith.constant 0 : index
    %c256 = arith.constant 256 : index
    %1 = vector.load %arg2[%c0_1, %c256] : memref<2x768xf32, #tpu.memory_space<vmem>>, vector<2x256xf32>
    %2 = arith.addf %0, %1 : vector<2x256xf32>
    %c0_2 = arith.constant 0 : index
    %c512 = arith.constant 512 : index
    %3 = vector.load %arg2[%c0_2, %c512] : memref<2x768xf32, #tpu.memory_space<vmem>>, vector<2x256xf32>
    %4 = arith.addf %2, %3 : vector<2x256xf32>
    %c1 = arith.constant 1 : index
    %c0_3 = arith.constant 0 : index
    %5 = vector.load %arg1[%c1, %c0_3] : memref<6x256xf32, #tpu.memory_space<vmem>>, vector<1x256xf32>
    %6 = vector.broadcast %5 : vector<1x256xf32> to vector<2x256xf32>
    %7 = arith.mulf %6, %4 : vector<2x256xf32>
    %c16_i32 = arith.constant 16 : i32
    %8 = tpu.dynamic_rotate %4 by %c16_i32 dim 1 : vector<2x256xf32>, i32 -> vector<2x256xf32>
    %c0_4 = arith.constant 0 : index
    %c0_5 = arith.constant 0 : index
    %9 = vector.load %arg1[%c0_4, %c0_5] : memref<6x256xf32, #tpu.memory_space<vmem>>, vector<1x256xf32>
    %10 = vector.broadcast %9 : vector<1x256xf32> to vector<2x256xf32>
    %11 = arith.mulf %10, %8 : vector<2x256xf32>
    %12 = arith.addf %7, %11 : vector<2x256xf32>
    %c240_i32 = arith.constant 240 : i32
    %13 = tpu.dynamic_rotate %4 by %c240_i32 dim 1 : vector<2x256xf32>, i32 -> vector<2x256xf32>
    %c2 = arith.constant 2 : index
    %c0_6 = arith.constant 0 : index
    %14 = vector.load %arg1[%c2, %c0_6] : memref<6x256xf32, #tpu.memory_space<vmem>>, vector<1x256xf32>
    %15 = vector.broadcast %14 : vector<1x256xf32> to vector<2x256xf32>
    %16 = arith.mulf %15, %13 : vector<2x256xf32>
    %17 = arith.addf %12, %16 : vector<2x256xf32>
    %c4 = arith.constant 4 : index
    %c0_7 = arith.constant 0 : index
    %18 = vector.load %arg1[%c4, %c0_7] : memref<6x256xf32, #tpu.memory_space<vmem>>, vector<1x256xf32>
    %19 = vector.broadcast %18 : vector<1x256xf32> to vector<2x256xf32>
    %20 = arith.mulf %19, %17 : vector<2x256xf32>
    %c1_i32 = arith.constant 1 : i32
    %21 = tpu.dynamic_rotate %17 by %c1_i32 dim 1 : vector<2x256xf32>, i32 -> vector<2x256xf32>
    %c3 = arith.constant 3 : index
    %c0_8 = arith.constant 0 : index
    %22 = vector.load %arg1[%c3, %c0_8] : memref<6x256xf32, #tpu.memory_space<vmem>>, vector<1x256xf32>
    %23 = vector.broadcast %22 : vector<1x256xf32> to vector<2x256xf32>
    %24 = arith.mulf %23, %21 : vector<2x256xf32>
    %25 = arith.addf %20, %24 : vector<2x256xf32>
    %c255_i32 = arith.constant 255 : i32
    %26 = tpu.dynamic_rotate %17 by %c255_i32 dim 1 : vector<2x256xf32>, i32 -> vector<2x256xf32>
    %c5 = arith.constant 5 : index
    %c0_9 = arith.constant 0 : index
    %27 = vector.load %arg1[%c5, %c0_9] : memref<6x256xf32, #tpu.memory_space<vmem>>, vector<1x256xf32>
    %28 = vector.broadcast %27 : vector<1x256xf32> to vector<2x256xf32>
    %29 = arith.mulf %28, %26 : vector<2x256xf32>
    %30 = arith.addf %25, %29 : vector<2x256xf32>
    %c0_10 = arith.constant 0 : index
    %c0_11 = arith.constant 0 : index
    %31 = vector.load %arg3[%c0_10, %c0_11] : memref<2x768xf32, #tpu.memory_space<vmem>>, vector<2x256xf32>
    tpu.vector_store %arg3[%c0_10, %c0_11], %30 {strides = array<i32>} : memref<2x768xf32, #tpu.memory_space<vmem>>, vector<2x256xf32>,
    %c0_12 = arith.constant 0 : index
    %c256_13 = arith.constant 256 : index
    %32 = vector.load %arg3[%c0_12, %c256_13] : memref<2x768xf32, #tpu.memory_space<vmem>>, vector<2x256xf32>
    tpu.vector_store %arg3[%c0_12, %c256_13], %30 {strides = array<i32>} : memref<2x768xf32, #tpu.memory_space<vmem>>, vector<2x256xf32>,
    %c0_14 = arith.constant 0 : index
    %c512_15 = arith.constant 512 : index
    %33 = vector.load %arg3[%c0_14, %c512_15] : memref<2x768xf32, #tpu.memory_space<vmem>>, vector<2x256xf32>
    tpu.vector_store %arg3[%c0_14, %c512_15], %30 {strides = array<i32>} : memref<2x768xf32, #tpu.memory_space<vmem>>, vector<2x256xf32>,
    return
  }
  func.func @transform_0(%arg0: i32) -> (i32, i32) {
    %c0_i32 = arith.constant 0 : i32
    %c0_i32_0 = arith.constant 0 : i32
    %c0_i32_1 = arith.constant 0 : i32
    return %c0_i32, %c0_i32_0 : i32, i32
  }
  func.func @transform_1(%arg0: i32) -> (i32, i32) {
    %c0_i32 = arith.constant 0 : i32
    %c0_i32_0 = arith.constant 0 : i32
    return %arg0, %c0_i32 : i32, i32
  }
  func.func @transform_2(%arg0: i32) -> (i32, i32) {
    %c0_i32 = arith.constant 0 : i32
    %c0_i32_0 = arith.constant 0 : i32
    return %arg0, %c0_i32 : i32, i32
  }
}

</mosaic_0001>

<llo_original>
// kernel: tpu_custom_call.1
$region0: #{tpu_custom_call.1}
  #allocation0 [shape = 'u32[]', space=smem, size = 0x4, offset = 0x4, fixed_abs, tag = 'smem constant byte address 0x4 - core index']
  #allocation1 [shape = 'u32[72,128]{1,0:T(1,128)}', space=vmem, size = 0x9000, scoped, tag = 'internal scratch']
  %s0 = inlined_call_operand.hbm [shape: f32[6,256], index: 0, kind: input, shape index: {}]
  %s1 = inlined_call_operand.hbm [shape: f32[2,768], index: 1, kind: input, shape index: {}]
  %s2 = inlined_call_operand.hbm [shape: f32[2,768], index: 2, kind: output, shape index: {}]
  %s3 = sld [smem:[#allocation0]]
  $region26: #{tpu_custom_call.1} parent=0
    _
  %s5 = ssub.s32 1, %s3
  %s6 = scalar_select 0, %s5, %s3
  $region1: #{tpu_custom_call.1} parent=0
    #allocation2 [shape = 'u8[8192]{0}', space=vmem, size = 0x2000, scoped, tag = 'input window, operand 0, single buffered']
    #allocation3 [shape = 's32[1]{0}', space=sflag, size = 0x4, scoped, tag = 'scoped memory for tpu_custom_call.1']
    #allocation4 [shape = 's32[1]{0}', space=sflag, size = 0x4, scoped, tag = 'scoped memory for tpu_custom_call.1']
    #allocation5 [shape = 'u8[6144]{0}', space=vmem, size = 0x1800, scoped, tag = 'input window, operand 1, single buffered']
    #allocation6 [shape = 's32[1]{0}', space=sflag, size = 0x4, scoped, tag = 'scoped memory for tpu_custom_call.1']
    #allocation7 [shape = 'u8[6144]{0}', space=vmem, size = 0x1800, scoped, tag = 'output window, operand 0, single buffered']
    %7 = vsyncpa [#allocation3], 0
    %8 = vsyncpa [#allocation6], 0
    %9 = vsyncpa [#allocation4], 0
    // Predicated region
    $region2: #{tpu_custom_call.1} parent=1 // pred_check
      _
    $region3: #{tpu_custom_call.1} parent=1 // pred_check_branch
      %11 = sbr.rel (0) target = $region5
    $region4: #{tpu_custom_call.1} parent=1 // pred_region
      %13 = vsyncadd [#allocation3], 0
      %s15 = sshll.u32 %s0, 4
      %s16 = int_to_ptr.hbm [resolvable:$true] %s15
      %s17 = sshll.u32 [#allocation2], 4
      %s18 = int_to_ptr.vmem [resolvable:$true] %s17
      %20 = dma.hbm_to_vmem [thread:$0]  %s16, 256, %s18, [#allocation3]
    $region5: #{tpu_custom_call.1} parent=1 // pred_fallthru
      _
    // Predicated region
    $region6: #{tpu_custom_call.1} parent=1 // pred_check
      _
    $region7: #{tpu_custom_call.1} parent=1 // pred_check_branch
      %22 = sbr.rel (0) target = $region9
    $region8: #{tpu_custom_call.1} parent=1 // pred_region
      %24 = vsyncadd [#allocation6], 0
      %s26 = sshll.u32 %s1, 4
      %s27 = int_to_ptr.hbm [resolvable:$true] %s26
      %s28 = sshll.u32 [#allocation5], 4
      %s29 = int_to_ptr.vmem [resolvable:$true] %s28
      %31 = dma.hbm_to_vmem [thread:$0]  %s27, 192, %s29, [#allocation6]
    $region9: #{tpu_custom_call.1} parent=1 // pred_fallthru
      _
    // Predicated region
    $region10: #{tpu_custom_call.1} parent=1 // pred_check
      _
    $region11: #{tpu_custom_call.1} parent=1 // pred_check_branch
      %33 = sbr.rel (0) target = $region13
    $region12: #{tpu_custom_call.1} parent=1 // pred_region
      %35 = dma.done [#allocation3], 256
    $region13: #{tpu_custom_call.1} parent=1 // pred_fallthru
      _
    // Predicated region
    $region14: #{tpu_custom_call.1} parent=1 // pred_check
      _
    $region15: #{tpu_custom_call.1} parent=1 // pred_check_branch
      %37 = sbr.rel (0) target = $region17
    $region16: #{tpu_custom_call.1} parent=1 // pred_region
      %39 = dma.done [#allocation6], 192
    $region17: #{tpu_custom_call.1} parent=1 // pred_fallthru
      _
    %v40 = vld [vmem:[#allocation5] sm:$0xf]
    %v41 = vld [vmem:[#allocation5 + $0x4] sm:$0xf]
    %v42 = vadd.f32 %v40, %v41
    %v43 = vld [vmem:[#allocation5 + $0x8] sm:$0xf]
    %v44 = vadd.f32 %v42, %v43
    %s45 = scalar_lea.vmem [#allocation2], 1
    %v46 = vld [vmem:[%s45] ss:$8 sm:$0x3]
    %v48 = vperm.slane %v46, 0
    %v49 = vperm.slane %v46, 1
    %53 = vst [vmem:[#allocation1] ss:$4 sm:$0xff] %v44
    %v54 = vld.sshfl [vmem:[#allocation1] sm:$0xff pattern:$0x73625140]
    %v55 = vld.sshfl [vmem:[#allocation1 + $0x8] sm:$0xff pattern:$0x73625140]
    %v58 = vmul.f32 %v48, %v54
    %v59 = vmul.f32 %v49, %v55
    %60 = vst [vmem:[#allocation1] ss:$4 sm:$0xff] %v44
    %v61 = vld.sshfl [vmem:[#allocation1] sm:$0xff pattern:$0x73625140]
    %v62 = vld.sshfl [vmem:[#allocation1 + $0x8] sm:$0xff pattern:$0x73625140]
    %65 = vrot.lane.b32.xlu0 %v61, 16
    %v66 = vpop.permute.xlu0 %65
    %67 = vrot.lane.b32.xlu0 %v62, 16
    %v68 = vpop.permute.xlu0 %67
    %v69 = vlaneseq
    %v70 = vand.u32 %v69, 127
    %vm71 = vcmp.lt.s32.totalorder %v70, 16
    %v72 = vsel %vm71, %v66, %v68
    %v73 = vsel %vm71, %v68, %v66
    %v74 = vld [vmem:[#allocation2] ss:$8 sm:$0x3]
    %v76 = vperm.slane %v74, 0
    %v77 = vperm.slane %v74, 1
    %v80 = vmul.f32 %v76, %v73
    %v81 = vmul.f32 %v77, %v72
    %v82 = vadd.f32 %v58, %v80
    %v83 = vadd.f32 %v59, %v81
    %84 = vst [vmem:[#allocation1] ss:$4 sm:$0xff] %v44
    %v85 = vld.sshfl [vmem:[#allocation1] sm:$0xff pattern:$0x73625140]
    %v86 = vld.sshfl [vmem:[#allocation1 + $0x8] sm:$0xff pattern:$0x73625140]
    %89 = vrot.lane.b32.xlu0 %v85, 112
    %v90 = vpop.permute.xlu0 %89
    %91 = vrot.lane.b32.xlu0 %v86, 112
    %v92 = vpop.permute.xlu0 %91
    %vm93 = vcmp.lt.s32.totalorder %v70, 112
    %v94 = vsel %vm93, %v90, %v92
    %v95 = vsel %vm93, %v92, %v90
    %s96 = scalar_lea.vmem [#allocation2], 2
    %v97 = vld [vmem:[%s96] ss:$8 sm:$0x3]
    %v99 = vperm.slane %v97, 0
    %v100 = vperm.slane %v97, 1
    %v103 = vmul.f32 %v99, %v94
    %v104 = vmul.f32 %v100, %v95
    %v105 = vadd.f32 %v82, %v103
    %v106 = vadd.f32 %v83, %v104
    %s107 = scalar_lea.vmem [#allocation2], 4
    %v108 = vld [vmem:[%s107] ss:$8 sm:$0x3]
    %v110 = vperm.slane %v108, 0
    %v111 = vperm.slane %v108, 1
    %v114 = vmul.f32 %v110, %v105
    %v115 = vmul.f32 %v111, %v106
    %116 = vrot.lane.b32.xlu0 %v105, 1
    %v117 = vpop.permute.xlu0 %116
    %118 = vrot.lane.b32.xlu0 %v106, 1
    %v119 = vpop.permute.xlu0 %118
    %vm120 = vcmp.lt.s32.totalorder %v70, 1
    %v121 = vsel %vm120, %v117, %v119
    %v122 = vsel %vm120, %v119, %v117
    %s123 = scalar_lea.vmem [#allocation2], 3
    %v124 = vld [vmem:[%s123] ss:$8 sm:$0x3]
    %v126 = vperm.slane %v124, 0
    %v127 = vperm.slane %v124, 1
    %v130 = vmul.f32 %v126, %v122
    %v131 = vmul.f32 %v127, %v121
    %v132 = vadd.f32 %v114, %v130
    %v133 = vadd.f32 %v115, %v131
    %134 = vrot.lane.b32.xlu0 %v105, 127
    %v135 = vpop.permute.xlu0 %134
    %136 = vrot.lane.b32.xlu0 %v106, 127
    %v137 = vpop.permute.xlu0 %136
    %vm138 = vcmp.lt.s32.totalorder %v70, 127
    %v139 = vsel %vm138, %v135, %v137
    %v140 = vsel %vm138, %v137, %v135
    %s141 = scalar_lea.vmem [#allocation2], 5
    %v142 = vld [vmem:[%s141] ss:$8 sm:$0x3]
    %v144 = vperm.slane %v142, 0
    %v145 = vperm.slane %v142, 1
    %v148 = vmul.f32 %v144, %v139
    %v149 = vmul.f32 %v145, %v140
    %v150 = vadd.f32 %v132, %v148
    %v151 = vadd.f32 %v133, %v149
    %v154 = vrot.slane %v151, 6
    %vm155 = vcmask 1041408
    %v156 = vsel %vm155, %v150, %v154
    %158 = vst [vmem:[#allocation7] sm:$0xf] %v156
    %159 = vst [vmem:[#allocation7 + $0x4] sm:$0xf] %v156
    %160 = vst [vmem:[#allocation7 + $0x8] sm:$0xf] %v156
    // Predicated region
    $region18: #{tpu_custom_call.1} parent=1 // pred_check
      _
    $region19: #{tpu_custom_call.1} parent=1 // pred_check_branch
      %162 = sbr.rel (0) target = $region21
    $region20: #{tpu_custom_call.1} parent=1 // pred_region
      %164 = vsyncadd [#allocation4], 0
      %s166 = sshll.u32 [#allocation7], 4
      %s167 = int_to_ptr.vmem [resolvable:$true] %s166
      %s168 = sshll.u32 %s2, 4
      %s169 = int_to_ptr.hbm [resolvable:$true] %s168
      %171 = dma.vmem_to_hbm [thread:$0]  %s167, 192, %s169, [#allocation4]
    $region21: #{tpu_custom_call.1} parent=1 // pred_fallthru
      _
    // Predicated region
    $region22: #{tpu_custom_call.1} parent=1 // pred_check
      _
    $region23: #{tpu_custom_call.1} parent=1 // pred_check_branch
      %173 = sbr.rel (0) target = $region25
    $region24: #{tpu_custom_call.1} parent=1 // pred_region
      %175 = dma.done [#allocation4], 192
    $region25: #{tpu_custom_call.1} parent=1 // pred_fallthru
      _
    %176 = vsyncpa [#allocation3], 1
    %177 = vsyncpa [#allocation6], 1
    %178 = vsyncpa [#allocation4], 1

</llo_original>
